<compile_context>
chip_gen: v6e
topology: v6e:2x2x1
jax: 0.10.0
libtpu: 0.0.40
codegen_flags: <defaults>
</compile_context>

<pallas_src>
import functools

import jax
import jax.numpy as jnp
from jax.experimental import pallas as pl
from jax.experimental.pallas import tpu as pltpu


# -----------------------------------------------------------------------------
# generation-aware VMEM budget
# -----------------------------------------------------------------------------

def _vmem_limit_bytes():
    cap = 64 * 1024 * 1024            # conservative default = v7x per-TC VMEM
    try:
        cap = int(pltpu.get_tpu_info().vmem_capacity_bytes)
    except Exception:
        pass
    # ~65% of physical VMEM, capped at 100 MiB: leaves headroom for compiler
    # internal scratch / semaphores on 64 MiB parts, larger tiles on 128 MiB parts.
    return min(int(cap * 0.65), 100 * 1024 * 1024)


_VMEM_LIMIT = _vmem_limit_bytes()
_TILE_BUDGET = int(_VMEM_LIMIT * 0.75)     # budget used for tile-size arithmetic

_TM_MAX, _TN_MAX, _TK_MAX = 512, 1024, 1024


# -----------------------------------------------------------------------------
# helpers
# -----------------------------------------------------------------------------

def _cdiv(a, b):
    return -(-a // b)


def _round_up(v, m):
    return _cdiv(v, m) * m


def _pad2(a, rows, cols):
    r, c = a.shape
    if r == rows and c == cols:
        return a
    return jnp.pad(a, ((0, rows - r), (0, cols - c)))


def _pick_tile(dim, cap, align):
    """Largest power-of-two multiple of `align` (<= cap) whose padding waste on
    `dim` stays <= dim/8.  Returns (tile, padded_dim); tile always divides
    padded_dim, and halving the tile keeps divisibility."""
    d = _round_up(dim, align)
    t = align
    while 2 * t <= cap and _round_up(d, 2 * t) - d <= d // 8:
        t *= 2
    return t, _round_up(d, t)


def _shrink_to_budget(tm, tn, tk, bytes_fn, budget):
    """Halve tiles (largest first) until the double-buffered working set fits."""
    while bytes_fn(tm, tn, tk) > budget:
        if tk >= max(tn, tm) and tk > 128:
            tk //= 2
        elif tn >= tm and tn > 128:
            tn //= 2
        elif tm > 8:
            tm //= 2
        else:
            break
    return tm, tn, tk


# -----------------------------------------------------------------------------
# Kernel 1: tiled linear  o = act(x @ w + b)   (used for the Generator)
#   x, w are bf16 (pre-cast outside the kernel); accumulation is f32.
# -----------------------------------------------------------------------------

def _linear_kernel(x_ref, w_ref, b_ref, o_ref, acc_ref, *, activation):
    kk = pl.program_id(2)

    @pl.when(kk == 0)
    def _():
        acc_ref[...] = jnp.zeros_like(acc_ref)

    acc_ref[...] += jnp.dot(x_ref[...], w_ref[...],
                            preferred_element_type=jnp.float32)

    @pl.when(kk == pl.num_programs(2) - 1)
    def _():
        acc = acc_ref[...] + b_ref[...]            # bias kept in f32
        if activation == "relu":
            acc = jnp.maximum(acc, 0.0)
        elif activation == "tanh":
            acc = jnp.tanh(acc)
        o_ref[...] = acc.astype(o_ref.dtype)       # f32 acc kept: output is bf16


class _LinearPlan:
    """Static tiling / padding plan (computed once at module init)."""

    def __init__(self, k, n, out_bytes):
        tk, kp = _pick_tile(k, _TK_MAX, 128)
        tn, npd = _pick_tile(n, _TN_MAX, 128)
        tm = _TM_MAX

        def cost(tm_, tn_, tk_):
            return (2 * tm_ * tk_ * 2          # x bf16, double-buffered
                    + 2 * tk_ * tn_ * 2        # w bf16, double-buffered
                    + 2 * tn_ * 4              # bias f32
                    + 2 * tm_ * tn_ * out_bytes
                    + tm_ * tn_ * 4)           # f32 accumulator

        tm, tn, tk = _shrink_to_budget(tm, tn, tk, cost, _TILE_BUDGET)
        self.tm_max, self.tn, self.tk = tm, tn, tk
        self.kp, self.np = kp, npd
        self.k, self.n = k, n


def pallas_linear(x, w_p, b_p, plan, *, activation=None, out_dtype=jnp.bfloat16):
    """x: (m, k).  w_p: (kp, np) bf16 pre-padded.  b_p: (1, np) f32 pre-padded."""
    m, k = x.shape
    assert k == plan.k
    kp, npd, tk = plan.kp, plan.np, plan.tk
    tn = plan.tn
    tm, mp = _pick_tile(m, plan.tm_max, 8)

    # Megacore: make sure the parallel (M, N) axes together have >=2 steps.
    while (mp // tm) * (npd // tn) < 2:
        if tn >= 256:
            tn //= 2
        elif tm >= 16:
            tm //= 2
        else:
            break

    xp = _pad2(x.astype(jnp.bfloat16), mp, kp)     # single activation cast + pad
    grid = (mp // tm, npd // tn, kp // tk)
    kern = functools.partial(_linear_kernel, activation=activation)
    out_bytes = jnp.dtype(out_dtype).itemsize

    out = pl.pallas_call(
        kern,
        out_shape=jax.ShapeDtypeStruct((mp, npd), out_dtype),
        grid_spec=pltpu.PrefetchScalarGridSpec(
            num_scalar_prefetch=0,
            grid=grid,
            in_specs=[
                pl.BlockSpec((tm, tk), lambda i, j, kk: (i, kk)),
                pl.BlockSpec((tk, tn), lambda i, j, kk: (kk, j)),
                pl.BlockSpec((1, tn), lambda i, j, kk: (0, j)),
            ],
            out_specs=pl.BlockSpec((tm, tn), lambda i, j, kk: (i, j)),
            scratch_shapes=[pltpu.VMEM((tm, tn), jnp.float32)],
        ),
        compiler_params=pltpu.CompilerParams(
            dimension_semantics=("parallel", "parallel", "arbitrary"),
            vmem_limit_bytes=_VMEM_LIMIT),
        cost_estimate=pl.CostEstimate(
            flops=2 * mp * npd * kp,
            transcendentals=mp * npd if activation == "tanh" else 0,
            bytes_accessed=(2 * mp * kp * (npd // tn)      # x re-read per N tile
                            + 2 * kp * npd * (mp // tm)    # w re-read per M tile
                            + 4 * npd
                            + out_bytes * mp * npd)),
    )(xp, w_p, b_p)
    return out[:m, :plan.n]


# -----------------------------------------------------------------------------
# Kernel 2: fused discriminator
#   h   = relu(x @ W1 + b1)                        (tiled over M, hidden and K)
#   out = sum(h * (w2_row + e), axis=1) + b2       (VPU mul + XLU reduce; no N=1
#                                                   MXU matmul)
# The projection head accumulates per-hidden-tile partial sums into a (tm, 128)
# f32 scratch; output is written as a lane-dense (tm, 128) slab (unmasked vst)
# and the wrapper slices column 0.
# -----------------------------------------------------------------------------

def _disc_fused_kernel(x_ref, w1_ref, b1_ref, w2_ref, e_ref, b2_ref,
                       o_ref, acc_ref, proj_ref):
    j = pl.program_id(1)       # hidden-dim tile
    kk = pl.program_id(2)      # reduction (K) tile
    nj = pl.num_programs(1)
    nk = pl.num_programs(2)

    @pl.when(jnp.logical_and(j == 0, kk == 0))
    def _():
        proj_ref[...] = jnp.zeros_like(proj_ref)

    @pl.when(kk == 0)
    def _():
        acc_ref[...] = jnp.zeros_like(acc_ref)

    acc_ref[...] += jnp.dot(x_ref[...], w1_ref[...],
                            preferred_element_type=jnp.float32)

    @pl.when(kk == nk - 1)
    def _():
        h = jnp.maximum(acc_ref[...] + b1_ref[...], 0.0)           # (tm, th) f32
        combo = (w2_ref[...].astype(jnp.float32)
                 + e_ref[...].astype(jnp.float32))                 # (tm, th)
        s = jnp.sum(h * combo, axis=1, keepdims=True)              # (tm, 1) XLU
        proj_ref[...] += jnp.broadcast_to(s, proj_ref.shape)

    @pl.when(jnp.logical_and(j == nj - 1, kk == nk - 1))
    def _():
        o_ref[...] = (proj_ref[...] + b2_ref[0, 0]).astype(o_ref.dtype)


class _DiscPlan:
    def __init__(self, k, hidden, out_bytes=4):
        tk, kp = _pick_tile(k, _TK_MAX, 128)
        th, hp = _pick_tile(hidden, _TN_MAX, 128)
        tm = _TM_MAX

        def cost(tm_, th_, tk_):
            return (2 * tm_ * tk_ * 2          # x bf16
                    + 2 * tk_ * th_ * 2        # w1 bf16
                    + 2 * th_ * 4              # b1 f32
                    + 2 * th_ * 2              # w2 bf16
                    + 2 * tm_ * th_ * 2        # e bf16
                    + 2 * tm_ * 128 * out_bytes
                    + tm_ * th_ * 4            # f32 matmul accumulator
                    + tm_ * 128 * 4)           # f32 projection partial sums

        tm, th, tk = _shrink_to_budget(tm, th, tk, cost, _TILE_BUDGET)
        self.tm_max, self.th, self.tk = tm, th, tk
        self.kp, self.hp = kp, hp
        self.k, self.hidden = k, hidden


def pallas_disc_fused(x_flat, e, w1_p, b1_p, w2_p, b2_s, plan,
                      *, out_dtype=jnp.float32):
    m, k = x_flat.shape
    assert k == plan.k and e.shape[1] == plan.hidden
    kp, hp, tk, th = plan.kp, plan.hp, plan.tk, plan.th
    tm, mp = _pick_tile(m, plan.tm_max, 8)

    # Megacore: give the second TensorCore an M tile when the batch allows it.
    while mp // tm < 2 and tm >= 16:
        tm //= 2

    xp = _pad2(x_flat.astype(jnp.bfloat16), mp, kp)
    ep = _pad2(e.astype(jnp.bfloat16), mp, hp)
    grid = (mp // tm, hp // th, kp // tk)

    out = pl.pallas_call(
        _disc_fused_kernel,
        out_shape=jax.ShapeDtypeStruct((mp, 128), out_dtype),
        grid_spec=pltpu.PrefetchScalarGridSpec(
            num_scalar_prefetch=0,
            grid=grid,
            in_specs=[
                pl.BlockSpec((tm, tk), lambda i, j, kk: (i, kk)),
                pl.BlockSpec((tk, th), lambda i, j, kk: (kk, j)),
                pl.BlockSpec((1, th), lambda i, j, kk: (0, j)),
                pl.BlockSpec((1, th), lambda i, j, kk: (0, j)),
                pl.BlockSpec((tm, th), lambda i, j, kk: (i, j)),
                pl.BlockSpec(memory_space=pltpu.MemorySpace.SMEM),
            ],
            out_specs=pl.BlockSpec((tm, 128), lambda i, j, kk: (i, 0)),
            scratch_shapes=[pltpu.VMEM((tm, th), jnp.float32),
                            pltpu.VMEM((tm, 128), jnp.float32)],
        ),
        compiler_params=pltpu.CompilerParams(
            dimension_semantics=("parallel", "arbitrary", "arbitrary"),
            vmem_limit_bytes=_VMEM_LIMIT),
        cost_estimate=pl.CostEstimate(
            flops=2 * mp * hp * kp + 3 * mp * hp,
            transcendentals=0,
            bytes_accessed=(2 * mp * kp * (hp // th)       # x re-read per h tile
                            + 2 * kp * hp * (mp // tm)     # w1 re-read per M tile
                            + 2 * mp * hp + 6 * hp + 4 * mp * 128)),
    )(xp, w1_p, b1_p, w2_p, ep, b2_s)
    return out[:m, :1]


# -----------------------------------------------------------------------------
# Synthetic Generator / Discriminator (deterministic params, forward in Pallas)
# -----------------------------------------------------------------------------

class Generator:
    """G(z, y): y = shared(gy); img = tanh(Linear([z, y])).reshape(N, C, H, W)."""

    def __init__(self, key, *, n_classes, dim_z, shared_dim, C, H, W, fp16=False):
        self.fp16 = fp16
        self.dim_z, self.shared_dim = dim_z, shared_dim
        self.C, self.H, self.W = C, H, W
        k1, k2, k3 = jax.random.split(key, 3)
        out = C * H * W
        self.shared_emb = 0.1 * jax.random.normal(k1, (n_classes, shared_dim), jnp.float32)
        self.W_g = 0.05 * jax.random.normal(k2, (dim_z + shared_dim, out), jnp.float32)
        self.b_g = 0.01 * jax.random.normal(k3, (out,), jnp.float32)

        # Generator output is bf16: D feeds bf16 to the MXU anyway, so this
        # halves the G_z HBM writeback + re-read with no change on the D path.
        self.out_dtype = jnp.bfloat16
        # Pad + cast weights ONCE (not per call); biases stay f32 (tiny rows).
        self.plan = _LinearPlan(dim_z + shared_dim, out,
                                out_bytes=jnp.dtype(self.out_dtype).itemsize)
        self.W_g_p = _pad2(self.W_g.astype(jnp.bfloat16), self.plan.kp, self.plan.np)
        self.b_g_p = _pad2(self.b_g.reshape(1, -1), 1, self.plan.np)

    def shared(self, gy):
        # class-embedding lookup (glue; gather stays in plain JAX)
        return self.shared_emb[gy]

    def __call__(self, z, y):
        zin = jnp.concatenate([z, y], axis=1)                  # (N, dim_z+shared_dim)
        flat = pallas_linear(zin, self.W_g_p, self.b_g_p, self.plan,
                             activation="tanh", out_dtype=self.out_dtype)
        # contiguous row-major reshape: free metadata op, no HBM relayout
        return flat.reshape(z.shape[0], self.C, self.H, self.W)   # NCHW, bf16


class Discriminator:
    """Projection discriminator, fully fused into one Pallas kernel:
       h = relu(Linear(flatten(x))); out = Linear(h) + sum(embed(y) * h)."""

    def __init__(self, key, *, n_classes, C, H, W, hidden, fp16=False):
        self.fp16 = fp16
        self.C, self.H, self.W, self.hidden = C, H, W, hidden
        k1, k2, k3, k4, k5 = jax.random.split(key, 5)
        in_dim = C * H * W
        self.W_d1 = 0.05 * jax.random.normal(k1, (in_dim, hidden), jnp.float32)
        self.b_d1 = 0.01 * jax.random.normal(k2, (hidden,), jnp.float32)
        self.W_d2 = 0.05 * jax.random.normal(k3, (hidden, 1), jnp.float32)
        self.b_d2 = 0.01 * jax.random.normal(k4, (1,), jnp.float32)
        self.class_emb = 0.1 * jax.random.normal(k5, (n_classes, hidden), jnp.float32)

        # Pad + cast static params ONCE at init.
        self.plan = _DiscPlan(in_dim, hidden)
        self.W_d1_p = _pad2(self.W_d1.astype(jnp.bfloat16), self.plan.kp, self.plan.hp)
        self.b_d1_p = _pad2(self.b_d1.reshape(1, -1), 1, self.plan.hp)             # f32
        self.W_d2_p = _pad2(self.W_d2.reshape(1, -1).astype(jnp.bfloat16), 1, self.plan.hp)
        self.b_d2_s = self.b_d2.reshape(1, 1).astype(jnp.float32)                  # SMEM scalar
        self.class_emb_bf16 = self.class_emb.astype(jnp.bfloat16)

    def __call__(self, x, y):
        n = x.shape[0]
        x_flat = x.reshape(n, self.C * self.H * self.W)        # free contiguous reshape
        e = self.class_emb_bf16[y]                             # (N, hidden) bf16 gather (glue)
        return pallas_disc_fused(x_flat, e, self.W_d1_p, self.b_d1_p,
                                 self.W_d2_p, self.b_d2_s, self.plan)   # (N, 1) f32


# -----------------------------------------------------------------------------
# G_D wrapper — mirrors the PyTorch forward exactly
# -----------------------------------------------------------------------------

class G_D:
    def __init__(self, G, D):
        self.G = G
        self.D = D

    def __call__(self, z, gy, x=None, dy=None, train_G=False,
                 return_G_z=False, split_D=False):
        # torch.set_grad_enabled(train_G) has no effect on forward values.
        G_z = self.G(z, self.G.shared(gy))
        if self.G.fp16 and (not self.D.fp16):
            G_z = G_z.astype(jnp.float32)
        if self.D.fp16 and (not self.G.fp16):
            G_z = G_z.astype(jnp.bfloat16)   # TPU-native half (torch .half())

        if split_D:
            D_fake = self.D(G_z, gy)
            if x is not None:
                D_real = self.D(x, dy)
                return (D_fake, D_real)
            elif return_G_z:
                return (D_fake, G_z)
            else:
                return D_fake
        else:
            # Concatenate in bf16 (D's MXU dtype): halves the HBM round trip and
            # avoids silently promoting the whole D input back to f32 when only
            # one of G/D runs in half precision.
            # TODO(synk): eliminate this concat entirely by feeding fake/real as
            # two inputs selected per M-tile via a scalar-prefetched row table.
            D_input = (jnp.concatenate([G_z.astype(jnp.bfloat16),
                                        x.astype(jnp.bfloat16)], 0)
                       if x is not None else G_z)
            D_class = jnp.concatenate([gy, dy], 0) if dy is not None else gy
            D_out = self.D(D_input, D_class)
            if x is not None:
                n_fake = G_z.shape[0]
                return (D_out[:n_fake], D_out[n_fake:])   # torch.split semantics
            elif return_G_z:
                return (D_out, G_z)
            else:
                return D_out


# -----------------------------------------------------------------------------
# Pure-JAX reference (mirrors the bf16 operand storage / bf16 G output)
# -----------------------------------------------------------------------------

def _ref_forward(G, D, z, gy, x, dy):
    y = G.shared_emb[gy]
    zin = jnp.concatenate([z, y], axis=1).astype(jnp.bfloat16)
    flat = jnp.tanh(jnp.dot(zin, G.W_g.astype(jnp.bfloat16),
                            preferred_element_type=jnp.float32) + G.b_g)
    G_z = flat.astype(jnp.bfloat16).reshape(z.shape[0], G.C, G.H, G.W)
    D_input = jnp.concatenate([G_z, x.astype(jnp.bfloat16)], 0)
    D_class = jnp.concatenate([gy, dy], 0)
    xf = D_input.reshape(D_input.shape[0], -1)
    h = jnp.maximum(jnp.dot(xf, D.W_d1.astype(jnp.bfloat16),
                            preferred_element_type=jnp.float32) + D.b_d1, 0.0)
    e = D.class_emb.astype(jnp.bfloat16)[D_class]
    combo = (D.W_d2.reshape(1, -1).astype(jnp.bfloat16).astype(jnp.float32)
             + e.astype(jnp.float32))
    out = jnp.sum(h * combo, axis=1, keepdims=True) + D.b_d2
    n_fake = z.shape[0]
    return out[:n_fake], out[n_fake:]


# -----------------------------------------------------------------------------
# Main
# -----------------------------------------------------------------------------

if __name__ == "__main__":
    key = jax.random.PRNGKey(0)
    k_g, k_d, k_z, k_x, k_gy, k_dy = jax.random.split(key, 6)

    B, C, H, W = 2, 4, 16, 16
    DIM_Z, SHARED_DIM, HIDDEN, N_CLASSES = 16, 8, 32, 10

    G = Generator(k_g, n_classes=N_CLASSES, dim_z=DIM_Z, shared_dim=SHARED_DIM,
                  C=C, H=H, W=W, fp16=False)
    D = Discriminator(k_d, n_classes=N_CLASSES, C=C, H=H, W=W, hidden=HIDDEN,
                      fp16=False)
    gd = G_D(G, D)

    z = jax.random.normal(k_z, (B, DIM_Z), jnp.float32)
    x = jax.random.normal(k_x, (B, C, H, W), jnp.float32)      # real images, NCHW
    gy = jax.random.randint(k_gy, (B,), 0, N_CLASSES, jnp.int32)
    dy = jax.random.randint(k_dy, (B,), 0, N_CLASSES, jnp.int32)

    D_fake, D_real = gd(z, gy, x=x, dy=dy)
    jax.block_until_ready((D_fake, D_real))

    ref_fake, ref_real = _ref_forward(G, D, z, gy, x, dy)
    assert D_fake.shape == (B, 1) and D_real.shape == (B, 1)
    assert jnp.allclose(D_fake, ref_fake, atol=1e-2, rtol=1e-2)
    assert jnp.allclose(D_real, ref_real, atol=1e-2, rtol=1e-2)

    print("KERNEL_OK")
</pallas_src>

<mosaic_0001>
module attributes {stable_mosaic.version = 11 : i64} {
  func.func @_linear_kernel(%arg0: i32, %arg1: i32, %arg2: i32, %arg3: memref<8x128xbf16, #tpu.memory_space<vmem>>, %arg4: memref<128x512xbf16, #tpu.memory_space<vmem>>, %arg5: memref<1x512xf32, #tpu.memory_space<vmem>>, %arg6: memref<8x512xbf16, #tpu.memory_space<vmem>>, %arg7: memref<8x512xf32, #tpu.memory_space<vmem>>) attributes {dimension_semantics = [#tpu.dimension_semantics<parallel>, #tpu.dimension_semantics<parallel>, #tpu.dimension_semantics<arbitrary>], iteration_bounds = array<i64: 1, 2, 1>, scalar_prefetch = 0 : i64, scratch_operands = 1 : i64, tpu.core_type = #tpu.core_type<tc>, window_params = [{transform_indices = @transform_0, window_bounds = array<i64: 8, 128>}, {transform_indices = @transform_1, window_bounds = array<i64: 128, 512>}, {transform_indices = @transform_2, window_bounds = array<i64: 1, 512>}, {transform_indices = @transform_3, window_bounds = array<i64: 8, 512>}]} {
    %c0_i32 = arith.constant 0 : i32
    %0 = arith.cmpi eq, %arg2, %c0_i32 : i32
    %1 = arith.extui %0 : i1 to i32
    %c0_i32_0 = arith.constant 0 : i32
    %2 = arith.cmpi ne, %1, %c0_i32_0 : i32
    scf.if %2 {
      %cst_10 = arith.constant 0.000000e+00 : f32
      %12 = vector.broadcast %cst_10 : f32 to vector<8x512xf32>
      %c0_11 = arith.constant 0 : index
      %c0_12 = arith.constant 0 : index
      %13 = vector.load %arg7[%c0_11, %c0_12] : memref<8x512xf32, #tpu.memory_space<vmem>>, vector<8x512xf32>
      tpu.vector_store %arg7[%c0_11, %c0_12], %12 {strides = array<i32>} : memref<8x512xf32, #tpu.memory_space<vmem>>, vector<8x512xf32>,
    } else {
    }
    %c0 = arith.constant 0 : index
    %c0_1 = arith.constant 0 : index
    %3 = vector.load %arg7[%c0, %c0_1] : memref<8x512xf32, #tpu.memory_space<vmem>>, vector<8x512xf32>
    %c0_2 = arith.constant 0 : index
    %c0_3 = arith.constant 0 : index
    %4 = vector.load %arg3[%c0_2, %c0_3] : memref<8x128xbf16, #tpu.memory_space<vmem>>, vector<8x128xbf16>
    %c0_4 = arith.constant 0 : index
    %c0_5 = arith.constant 0 : index
    %5 = vector.load %arg4[%c0_4, %c0_5] : memref<128x512xbf16, #tpu.memory_space<vmem>>, vector<128x512xbf16>
    %cst = arith.constant dense<0.000000e+00> : vector<8x512xf32>
    %6 = tpu.matmul %4, %5, %cst {dimension_numbers = #tpu.dot_dimension_numbers<[1], [0], [0], [1], [0, 0, 1, 1], [], []>} : vector<8x128xbf16>, vector<128x512xbf16>, vector<8x512xf32> -> vector<8x512xf32>
    %7 = arith.addf %3, %6 : vector<8x512xf32>
    %c0_6 = arith.constant 0 : index
    %c0_7 = arith.constant 0 : index
    %8 = vector.load %arg7[%c0_6, %c0_7] : memref<8x512xf32, #tpu.memory_space<vmem>>, vector<8x512xf32>
    tpu.vector_store %arg7[%c0_6, %c0_7], %7 {strides = array<i32>} : memref<8x512xf32, #tpu.memory_space<vmem>>, vector<8x512xf32>,
    %c0_i32_8 = arith.constant 0 : i32
    %9 = arith.cmpi eq, %arg2, %c0_i32_8 : i32
    %10 = arith.extui %9 : i1 to i32
    %c0_i32_9 = arith.constant 0 : i32
    %11 = arith.cmpi ne, %10, %c0_i32_9 : i32
    scf.if %11 {
      %c0_10 = arith.constant 0 : index
      %c0_11 = arith.constant 0 : index
      %12 = vector.load %arg7[%c0_10, %c0_11] : memref<8x512xf32, #tpu.memory_space<vmem>>, vector<8x512xf32>
      %c0_12 = arith.constant 0 : index
      %c0_13 = arith.constant 0 : index
      %13 = vector.load %arg5[%c0_12, %c0_13] : memref<1x512xf32, #tpu.memory_space<vmem>>, vector<1x512xf32>
      %14 = vector.broadcast %13 : vector<1x512xf32> to vector<8x512xf32>
      %15 = arith.addf %12, %14 : vector<8x512xf32>
      %16 = math.tanh %15 : vector<8x512xf32>
      %17 = arith.truncf %16 : vector<8x512xf32> to vector<8x512xbf16>
      %c0_14 = arith.constant 0 : index
      %c0_15 = arith.constant 0 : index
      %18 = vector.load %arg6[%c0_14, %c0_15] : memref<8x512xbf16, #tpu.memory_space<vmem>>, vector<8x512xbf16>
      tpu.vector_store %arg6[%c0_14, %c0_15], %17 {strides = array<i32>} : memref<8x512xbf16, #tpu.memory_space<vmem>>, vector<8x512xbf16>,
    } else {
    }
    return
  }
  func.func @transform_0(%arg0: i32, %arg1: i32, %arg2: i32) -> (i32, i32) {
    %c0_i32 = arith.constant 0 : i32
    return %arg0, %arg2 : i32, i32
  }
  func.func @transform_1(%arg0: i32, %arg1: i32, %arg2: i32) -> (i32, i32) {
    %c0_i32 = arith.constant 0 : i32
    return %arg2, %arg1 : i32, i32
  }
  func.func @transform_2(%arg0: i32, %arg1: i32, %arg2: i32) -> (i32, i32) {
    %c0_i32 = arith.constant 0 : i32
    %c0_i32_0 = arith.constant 0 : i32
    return %c0_i32, %arg1 : i32, i32
  }
  func.func @transform_3(%arg0: i32, %arg1: i32, %arg2: i32) -> (i32, i32) {
    %c0_i32 = arith.constant 0 : i32
    return %arg0, %arg1 : i32, i32
  }
}

</mosaic_0001>

<llo_original>
// kernel: tpu_custom_call.1
$region0: #{tpu_custom_call.1}
  #allocation0 [shape = 'u32[]', space=smem, size = 0x4, offset = 0x4, fixed_abs, tag = 'smem constant byte address 0x4 - core index']
  #allocation1 [shape = 'u32[144,128]{1,0:T(1,128)}', space=vmem, size = 0x12000, scoped, tag = 'internal scratch']
  #allocation2 [shape = 'f32[8,512]{1,0:T(8,128)}', space=vmem, size = 0x4000, scoped, tag = 'scratch operand']
  %s0 = inlined_call_operand.hbm [shape: bf16[8,128], index: 0, kind: input, shape index: {}]
  %s1 = inlined_call_operand.hbm [shape: bf16[128,1024], index: 1, kind: input, shape index: {}]
  %s2 = inlined_call_operand.hbm [shape: f32[1,1024], index: 2, kind: input, shape index: {}]
  %s3 = inlined_call_operand.hbm [shape: bf16[8,1024], index: 3, kind: output, shape index: {}]
  %s4 = sld [smem:[#allocation0]]
  $region65: #{tpu_custom_call.1} parent=0
    _
  %s6 = ssub.s32 1, %s4
  %s7 = scalar_select 0, %s6, %s4
  $region1: #{tpu_custom_call.1} parent=0
    #allocation3 [shape = 'u8[2048]{0}', space=vmem, size = 0x800, scoped, tag = 'input window, operand 0, single buffered']
    #allocation4 [shape = 's32[2]{0}', space=sflag, size = 0x8, scoped, tag = 'scoped memory for tpu_custom_call.1']
    #allocation5 [shape = 's32[2]{0}', space=sflag, size = 0x8, scoped, tag = 'scoped memory for tpu_custom_call.1']
    #allocation6 [shape = 'u8[262144]{0}', space=vmem, size = 0x40000, scoped, tag = 'input window, operand 1']
    #allocation7 [shape = 's32[2]{0}', space=sflag, size = 0x8, scoped, tag = 'scoped memory for tpu_custom_call.1']
    #allocation8 [shape = 'u8[4096]{0}', space=vmem, size = 0x1000, scoped, tag = 'input window, operand 2']
    #allocation9 [shape = 'u8[16384]{0}', space=vmem, size = 0x4000, scoped, tag = 'output window, operand 0']
    %8 = vsyncpa [#allocation4], 0
    %9 = vsyncpa [#allocation7], 0
    %s10 = scalar_lea.sflag [#allocation7], 1
    %11 = vsyncpa %s10, 0
    %12 = vsyncpa [#allocation5], 0
    %s13 = scalar_lea.sflag [#allocation5], 1
    %14 = vsyncpa %s13, 0
    loop: start=0, step=1, limit=4
    $region2: #{tpu_custom_call.1} parent=1 // loop_pre_header
      _
    $region3: #{tpu_custom_call.1} parent=1 // loop_header
      %s16 = sphi 0, %s20
      %p17 = scmp.ge.s32.totalorder %s16, 4
      %s23 = sphi 0, %s42
      %s24 = sphi 0, %s38
      %s25 = sphi 0, %s34
      %s26 = sphi 0, %s23
      %s27 = sphi 0, %s24
      %s28 = sphi 0, %s25
      %s29 = sphi 0, %s26
      %s30 = sphi 0, %s27
      %s31 = sphi 0, %s28
      %s47 = sphi 0, %s49
      %s50 = sphi 0, %s47
      %s51 = sphi 0, %s50
      %s67 = sphi 0, %s51
      %s75 = sphi 0, %s77
      %s78 = sphi 0, %s75
      %s79 = sphi 0, %s78
      %s95 = sphi 0, %s79
      %s101 = sphi 0, %s103
      %s104 = sphi 0, %s101
      %s105 = sphi 0, %s104
      %s121 = sphi 0, %s105
      %s129 = sphi 0, %s131
      %s132 = sphi 0, %s129
      %s133 = sphi 0, %s132
      %s149 = sphi 0, %s133
    $region4: #{tpu_custom_call.1} parent=1 // loop_header_branch
      %19 = sbr.rel (%p17) target = $region8
    $region5: #{tpu_custom_call.1} parent=1 // loop_body
      %s21 = ssub.s32 %s16, 1
      %s22 = ssub.s32 %s16, 2
      %s32 = sadd.s32 1, %s25
      %p33 = scmp.ge.s32.totalorder %s32, 1
      %s34 = scalar_select %p33, 0, %s32
      %s35 = sadd.s32 1, %s24
      %s36 = scalar_select %p33, %s35, %s24
      %p37 = scmp.ge.s32.totalorder %s36, 2
      %s38 = scalar_select %p37, 0, %s36
      %s39 = sadd.s32 1, %s23
      %s40 = scalar_select %p37, %s39, %s23
      %p41 = scmp.ge.s32.totalorder %s40, 1
      %s42 = scalar_select %p41, 0, %s40
      %s43 = ssub.s32 %s23, %s42
      %s44 = ssub.s32 %s25, %s34
      %s45 = sor.u32 %s43, %s44
      %p46 = scmp.eq.s32.totalorder %s45, 0
      %s48 = sadd.s32 %s47, 1
      %s49 = scalar_select %p46, %s47, %s48
      %p52 = pneg %p46
      %p53 = scmp.eq.s32.totalorder %s16, 1
      %p54 = por %p52, %p53
      %p55 = scmp.ne.s32.totalorder %s47, %s50
      %p56 = scmp.eq.s32.totalorder %s16, 0
      %p57 = por %p55, %p56
      %p58 = scmp.ne.s32.totalorder %s47, %s50
      %p59 = scmp.eq.s32.totalorder %s21, 1
      %p60 = por %p58, %p59
      %p61 = scmp.ne.s32.totalorder %s50, %s51
      %p62 = scmp.eq.s32.totalorder %s21, 0
      %p63 = por %p61, %p62
      %p64 = scmp.ne.s32.totalorder %s50, %s51
      %p65 = scmp.eq.s32.totalorder %s22, 1
      %p66 = por %p64, %p65
      %p68 = scmp.ne.s32.totalorder %s51, %s67
      %p69 = scmp.eq.s32.totalorder %s22, 0
      %p70 = por %p68, %p69
      %s71 = ssub.s32 %s25, %s34
      %s72 = ssub.s32 %s24, %s38
      %s73 = sor.u32 %s71, %s72
      %p74 = scmp.eq.s32.totalorder %s73, 0
      %s76 = sadd.s32 %s75, 1
      %s77 = scalar_select %p74, %s75, %s76
      %p80 = pneg %p74
      %p81 = scmp.eq.s32.totalorder %s16, 1
      %p82 = por %p80, %p81
      %p83 = scmp.ne.s32.totalorder %s75, %s78
      %p84 = scmp.eq.s32.totalorder %s16, 0
      %p85 = por %p83, %p84
      %p86 = scmp.ne.s32.totalorder %s75, %s78
      %p87 = scmp.eq.s32.totalorder %s21, 1
      %p88 = por %p86, %p87
      %p89 = scmp.ne.s32.totalorder %s78, %s79
      %p90 = scmp.eq.s32.totalorder %s21, 0
      %p91 = por %p89, %p90
      %p92 = scmp.ne.s32.totalorder %s78, %s79
      %p93 = scmp.eq.s32.totalorder %s22, 1
      %p94 = por %p92, %p93
      %p96 = scmp.ne.s32.totalorder %s79, %s95
      %p97 = scmp.eq.s32.totalorder %s22, 0
      %p98 = por %p96, %p97
      %s99 = ssub.s32 %s24, %s38
      %p100 = scmp.eq.s32.totalorder %s99, 0
      %s102 = sadd.s32 %s101, 1
      %s103 = scalar_select %p100, %s101, %s102
      %p106 = pneg %p100
      %p107 = scmp.eq.s32.totalorder %s16, 1
      %p108 = por %p106, %p107
      %p109 = scmp.ne.s32.totalorder %s101, %s104
      %p110 = scmp.eq.s32.totalorder %s16, 0
      %p111 = por %p109, %p110
      %p112 = scmp.ne.s32.totalorder %s101, %s104
      %p113 = scmp.eq.s32.totalorder %s21, 1
      %p114 = por %p112, %p113
      %p115 = scmp.ne.s32.totalorder %s104, %s105
      %p116 = scmp.eq.s32.totalorder %s21, 0
      %p117 = por %p115, %p116
      %p118 = scmp.ne.s32.totalorder %s104, %s105
      %p119 = scmp.eq.s32.totalorder %s22, 1
      %p120 = por %p118, %p119
      %p122 = scmp.ne.s32.totalorder %s105, %s121
      %p123 = scmp.eq.s32.totalorder %s22, 0
      %p124 = por %p122, %p123
      %s125 = ssub.s32 %s23, %s42
      %s126 = ssub.s32 %s24, %s38
      %s127 = sor.u32 %s125, %s126
      %p128 = scmp.eq.s32.totalorder %s127, 0
      %s130 = sadd.s32 %s129, 1
      %s131 = scalar_select %p128, %s129, %s130
      %p134 = pneg %p128
      %p135 = scmp.eq.s32.totalorder %s16, 1
      %p136 = por %p134, %p135
      %p137 = scmp.ne.s32.totalorder %s129, %s132
      %p138 = scmp.eq.s32.totalorder %s16, 0
      %p139 = por %p137, %p138
      %p140 = scmp.ne.s32.totalorder %s129, %s132
      %p141 = scmp.eq.s32.totalorder %s21, 1
      %p142 = por %p140, %p141
      %p143 = scmp.ne.s32.totalorder %s132, %s133
      %p144 = scmp.eq.s32.totalorder %s21, 0
      %p145 = por %p143, %p144
      %p146 = scmp.ne.s32.totalorder %s132, %s133
      %p147 = scmp.eq.s32.totalorder %s22, 1
      %p148 = por %p146, %p147
      %p150 = scmp.ne.s32.totalorder %s133, %s149
      %p151 = scmp.eq.s32.totalorder %s22, 0
      %p152 = por %p150, %p151
      %p153 = scmp.le.s32.totalorder 1, %s16
      %p154 = scmp.lt.s32.totalorder %s16, 3
      %p155 = pnand %p153, %p154
      %p156 = pneg %p155
      // Predicated region
      $region9: #{tpu_custom_call.1} parent=5 // pred_check
        _
      $region10: #{tpu_custom_call.1} parent=5 // pred_check_branch
        %158 = sbr.rel (%p155) target = $region12
      $region11: #{tpu_custom_call.1} parent=5 // pred_region
        %s159 = ssub.s32 %s16, 1
        // Predicated region
        $region13: #{tpu_custom_call.1} parent=11 // pred_check
          %p160 = pneg %p63
        $region14: #{tpu_custom_call.1} parent=11 // pred_check_branch
          %162 = sbr.rel (%p160) target = $region16
        $region15: #{tpu_custom_call.1} parent=11 // pred_region
          %s164 = ssub.s32 64, 64
          %165 = vsyncadd [#allocation4], %s164
          %s166 = sadd.s32 %s28, %s26
          %s167 = smul.addr %s166, 64
          %s168 = scalar_lea.hbm %s0, %s167
          %s170 = sshll.u32 [#allocation3], 4
          %s171 = int_to_ptr.vmem [resolvable:$true] %s170
          %173 = dma.hbm_to_vmem [thread:$0]  %s168, 64, %s171, [#allocation4]
        $region16: #{tpu_custom_call.1} parent=11 // pred_fallthru
          _
      $region12: #{tpu_custom_call.1} parent=5 // pred_fallthru
        _
      %p174 = scmp.lt.s32.totalorder %s16, 2
      // Predicated region
      $region17: #{tpu_custom_call.1} parent=5 // pred_check
        %p175 = pneg %p174
      $region18: #{tpu_custom_call.1} parent=5 // pred_check_branch
        %177 = sbr.rel (%p175) target = $region20
      $region19: #{tpu_custom_call.1} parent=5 // pred_region
        // Predicated region
        $region21: #{tpu_custom_call.1} parent=19 // pred_check
          %p178 = pneg %p85
        $region22: #{tpu_custom_call.1} parent=19 // pred_check_branch
          %180 = sbr.rel (%p178) target = $region24
        $region23: #{tpu_custom_call.1} parent=19 // pred_region
          %s181 = sand.u32 %s16, 1
          %s182 = scalar_lea.sflag [#allocation7], %s181
          %s183 = sand.u32 %s75, 1
          %s184 = smul.addr %s183, 256
          %s185 = scalar_lea.vmem [#allocation6], %s184
          %s186 = smul.u32 16, %s25
          %s187 = smul.u32 4, %s24
          %s189 = ssub.s32 4096, 4096
          %190 = vsyncadd %s182, %s189
          %s191 = smul.addr %s186, 8
          %s192 = sadd.s32 %s187, %s191
          %s193 = smul.addr %s192, 64
          %s194 = scalar_lea.hbm %s1, %s193
          %s195 = sshll.u32 %s185, 4
          %s196 = int_to_ptr.vmem [resolvable:$true] %s195
          %201 = dma.hbm_to_vmem [thread:$0]  %s194, 4096, %s196, %s182, 512, 256, 16
        $region24: #{tpu_custom_call.1} parent=19 // pred_fallthru
          _
        // Predicated region
        $region25: #{tpu_custom_call.1} parent=19 // pred_check
          %p202 = pneg %p111
        $region26: #{tpu_custom_call.1} parent=19 // pred_check_branch
          %204 = sbr.rel (%p202) target = $region28
        $region27: #{tpu_custom_call.1} parent=19 // pred_region
          %s205 = sand.u32 %s16, 1
          %s206 = scalar_lea.sflag [#allocation7], %s205
          %s207 = sand.u32 %s101, 1
          %s208 = smul.addr %s207, 4
          %s209 = scalar_lea.vmem [#allocation8], %s208
          %s210 = smul.u32 4, %s24
          %s212 = ssub.s32 64, 64
          %213 = vsyncadd %s206, %s212
          %s214 = smul.addr %s210, 16
          %s215 = scalar_lea.hbm %s2, %s214
          %s217 = sshll.u32 %s209, 4
          %s218 = int_to_ptr.vmem [resolvable:$true] %s217
          %220 = dma.hbm_to_vmem [thread:$0]  %s215, 64, %s218, %s206
        $region28: #{tpu_custom_call.1} parent=19 // pred_fallthru
          _
      $region20: #{tpu_custom_call.1} parent=5 // pred_fallthru
        _
      %p221 = scmp.le.s32.totalorder 1, %s16
      %p222 = scmp.lt.s32.totalorder %s16, 3
      %p223 = pnand %p221, %p222
      %p224 = pneg %p223
      // Predicated region
      $region29: #{tpu_custom_call.1} parent=5 // pred_check
        _
      $region30: #{tpu_custom_call.1} parent=5 // pred_check_branch
        %226 = sbr.rel (%p223) target = $region32
      $region31: #{tpu_custom_call.1} parent=5 // pred_region
        %s227 = ssub.s32 %s16, 1
        // Predicated region
        $region33: #{tpu_custom_call.1} parent=31 // pred_check
          %p228 = pneg %p63
        $region34: #{tpu_custom_call.1} parent=31 // pred_check_branch
          %230 = sbr.rel (%p228) target = $region36
        $region35: #{tpu_custom_call.1} parent=31 // pred_region
          %231 = dma.done [#allocation4], 64
        $region36: #{tpu_custom_call.1} parent=31 // pred_fallthru
          _
        %s232 = sand.u32 %s21, 1
        %s233 = scalar_lea.sflag [#allocation7], %s232
        %s234 = sand.u32 %s78, 1
        %s235 = smul.addr %s234, 256
        %s236 = scalar_lea.vmem [#allocation6], %s235
        // Predicated region
        $region37: #{tpu_custom_call.1} parent=31 // pred_check
          %p237 = pneg %p91
        $region38: #{tpu_custom_call.1} parent=31 // pred_check_branch
          %239 = sbr.rel (%p237) target = $region40
        $region39: #{tpu_custom_call.1} parent=31 // pred_region
          %240 = dma.done %s233, 4096
        $region40: #{tpu_custom_call.1} parent=31 // pred_fallthru
          _
        %s241 = sand.u32 %s21, 1
        %s242 = scalar_lea.sflag [#allocation7], %s241
        %s243 = sand.u32 %s104, 1
        %s244 = smul.addr %s243, 4
        %s245 = scalar_lea.vmem [#allocation8], %s244
        // Predicated region
        $region41: #{tpu_custom_call.1} parent=31 // pred_check
          %p246 = pneg %p117
        $region42: #{tpu_custom_call.1} parent=31 // pred_check_branch
          %248 = sbr.rel (%p246) target = $region44
        $region43: #{tpu_custom_call.1} parent=31 // pred_region
          %249 = dma.done %s242, 64
        $region44: #{tpu_custom_call.1} parent=31 // pred_fallthru
          _
        %p250 = pneg %p63
        %p251 = pneg %p60
        %s252 = sand.u32 %s21, 1
        %s253 = scalar_lea.sflag [#allocation7], %s252
        %s254 = sand.u32 %s78, 1
        %s255 = smul.addr %s254, 256
        %s256 = scalar_lea.vmem [#allocation6], %s255
        %p257 = pneg %p91
        %p258 = pneg %p88
        %s259 = sand.u32 %s21, 1
        %s260 = scalar_lea.sflag [#allocation7], %s259
        %s261 = sand.u32 %s104, 1
        %s262 = smul.addr %s261, 4
        %s263 = scalar_lea.vmem [#allocation8], %s262
        %p264 = pneg %p117
        %p265 = pneg %p114
        %p266 = pneg %p145
        %p267 = pneg %p142
        %s268 = sand.u32 %s132, 1
        %s269 = scalar_lea.sflag [#allocation5], %s268
        %s270 = sand.u32 %s132, 1
        %s271 = smul.addr %s270, 16
        %s272 = scalar_lea.vmem [#allocation9], %s271
        %s273 = smul.u32 16, %s28
        %s274 = smul.u32 4, %s27
        %s275 = smul.u32 4, %s27
        %s276 = smul.u32 4, %s27
        %p278 = scmp.eq.s32.totalorder %s28, 0
        // Predicated region
        $region45: #{tpu_custom_call.1} parent=31 // pred_check
          %p279 = pneg %p278
        $region46: #{tpu_custom_call.1} parent=31 // pred_check_branch
          %281 = sbr.rel (%p279) target = $region48
        $region47: #{tpu_custom_call.1} parent=31 // pred_region
          %282 = vst [vmem:[#allocation2] sm:$0xff] 0.0
          %283 = vst [vmem:[#allocation2 + $0x8] sm:$0xff] 0.0
          %284 = vst [vmem:[#allocation2 + $0x10] sm:$0xff] 0.0
          %285 = vst [vmem:[#allocation2 + $0x18] sm:$0xff] 0.0
        $region48: #{tpu_custom_call.1} parent=31 // pred_fallthru
          _
        %v286 = vld [vmem:[#allocation2] sm:$0xff]
        %v287 = vld [vmem:[#allocation2 + $0x8] sm:$0xff]
        %v288 = vld [vmem:[#allocation2 + $0x10] sm:$0xff]
        %v289 = vld [vmem:[#allocation2 + $0x18] sm:$0xff]
        %v290 = vld [vmem:[#allocation3] sm:$0xf]
        %v291 = vld [vmem:[%s236] sm:$0xff]
        %v292 = vld [vmem:[%s236 + $0x8] sm:$0xff]
        %v293 = vld [vmem:[%s236 + $0x10] sm:$0xff]
        %v294 = vld [vmem:[%s236 + $0x18] sm:$0xff]
        %v295 = vld [vmem:[%s236 + $0x20] sm:$0xff]
        %v296 = vld [vmem:[%s236 + $0x28] sm:$0xff]
        %v297 = vld [vmem:[%s236 + $0x30] sm:$0xff]
        %v298 = vld [vmem:[%s236 + $0x38] sm:$0xff]
        %v299 = vld [vmem:[%s236 + $0x40] sm:$0xff]
        %v300 = vld [vmem:[%s236 + $0x48] sm:$0xff]
        %v301 = vld [vmem:[%s236 + $0x50] sm:$0xff]
        %v302 = vld [vmem:[%s236 + $0x58] sm:$0xff]
        %v303 = vld [vmem:[%s236 + $0x60] sm:$0xff]
        %v304 = vld [vmem:[%s236 + $0x68] sm:$0xff]
        %v305 = vld [vmem:[%s236 + $0x70] sm:$0xff]
        %v306 = vld [vmem:[%s236 + $0x78] sm:$0xff]
        %v307 = vld [vmem:[%s236 + $0x80] sm:$0xff]
        %v308 = vld [vmem:[%s236 + $0x88] sm:$0xff]
        %v309 = vld [vmem:[%s236 + $0x90] sm:$0xff]
        %v310 = vld [vmem:[%s236 + $0x98] sm:$0xff]
        %v311 = vld [vmem:[%s236 + $0xa0] sm:$0xff]
        %v312 = vld [vmem:[%s236 + $0xa8] sm:$0xff]
        %v313 = vld [vmem:[%s236 + $0xb0] sm:$0xff]
        %v314 = vld [vmem:[%s236 + $0xb8] sm:$0xff]
        %v315 = vld [vmem:[%s236 + $0xc0] sm:$0xff]
        %v316 = vld [vmem:[%s236 + $0xc8] sm:$0xff]
        %v317 = vld [vmem:[%s236 + $0xd0] sm:$0xff]
        %v318 = vld [vmem:[%s236 + $0xd8] sm:$0xff]
        %v319 = vld [vmem:[%s236 + $0xe0] sm:$0xff]
        %v320 = vld [vmem:[%s236 + $0xe8] sm:$0xff]
        %v321 = vld [vmem:[%s236 + $0xf0] sm:$0xff]
        %v322 = vld [vmem:[%s236 + $0xf8] sm:$0xff]
        %v355 = vunpack.c.l.b16 %v291
        %v356 = vunpack.c.h.b16 %v291
        %v357 = vunpack.c.l.b16 %v292
        %v358 = vunpack.c.h.b16 %v292
        %v359 = vunpack.c.l.b16 %v293
        %v360 = vunpack.c.h.b16 %v293
        %v361 = vunpack.c.l.b16 %v294
        %v362 = vunpack.c.h.b16 %v294
        %v363 = vunpack.c.l.b16 %v295
        %v364 = vunpack.c.h.b16 %v295
        %v365 = vunpack.c.l.b16 %v296
        %v366 = vunpack.c.h.b16 %v296
        %v367 = vunpack.c.l.b16 %v297
        %v368 = vunpack.c.h.b16 %v297
        %v369 = vunpack.c.l.b16 %v298
        %v370 = vunpack.c.h.b16 %v298
        %v371 = vunpack.c.l.b16 %v299
        %v372 = vunpack.c.h.b16 %v299
        %v373 = vunpack.c.l.b16 %v300
        %v374 = vunpack.c.h.b16 %v300
        %v375 = vunpack.c.l.b16 %v301
        %v376 = vunpack.c.h.b16 %v301
        %v377 = vunpack.c.l.b16 %v302
        %v378 = vunpack.c.h.b16 %v302
        %v379 = vunpack.c.l.b16 %v303
        %v380 = vunpack.c.h.b16 %v303
        %v381 = vunpack.c.l.b16 %v304
        %v382 = vunpack.c.h.b16 %v304
        %v383 = vunpack.c.l.b16 %v305
        %v384 = vunpack.c.h.b16 %v305
        %v385 = vunpack.c.l.b16 %v306
        %v386 = vunpack.c.h.b16 %v306
        %v387 = vunpack.c.l.b16 %v307
        %v388 = vunpack.c.h.b16 %v307
        %v389 = vunpack.c.l.b16 %v308
        %v390 = vunpack.c.h.b16 %v308
        %v391 = vunpack.c.l.b16 %v309
        %v392 = vunpack.c.h.b16 %v309
        %v393 = vunpack.c.l.b16 %v310
        %v394 = vunpack.c.h.b16 %v310
        %v395 = vunpack.c.l.b16 %v311
        %v396 = vunpack.c.h.b16 %v311
        %v397 = vunpack.c.l.b16 %v312
        %v398 = vunpack.c.h.b16 %v312
        %v399 = vunpack.c.l.b16 %v313
        %v400 = vunpack.c.h.b16 %v313
        %v401 = vunpack.c.l.b16 %v314
        %v402 = vunpack.c.h.b16 %v314
        %v403 = vunpack.c.l.b16 %v315
        %v404 = vunpack.c.h.b16 %v315
        %v405 = vunpack.c.l.b16 %v316
        %v406 = vunpack.c.h.b16 %v316
        %v407 = vunpack.c.l.b16 %v317
        %v408 = vunpack.c.h.b16 %v317
        %v409 = vunpack.c.l.b16 %v318
        %v410 = vunpack.c.h.b16 %v318
        %v411 = vunpack.c.l.b16 %v319
        %v412 = vunpack.c.h.b16 %v319
        %v413 = vunpack.c.l.b16 %v320
        %v414 = vunpack.c.h.b16 %v320
        %v415 = vunpack.c.l.b16 %v321
        %v416 = vunpack.c.h.b16 %v321
        %v417 = vunpack.c.l.b16 %v322
        %v418 = vunpack.c.h.b16 %v322
        %v419 = vpack.c.b16 %v359, %v355
        %v420 = vpack.c.b16 %v360, %v356
        %v421 = vpack.c.b16 %v361, %v357
        %v422 = vpack.c.b16 %v362, %v358
        %v423 = vpack.c.b16 %v367, %v363
        %v424 = vpack.c.b16 %v368, %v364
        %v425 = vpack.c.b16 %v369, %v365
        %v426 = vpack.c.b16 %v370, %v366
        %v427 = vpack.c.b16 %v375, %v371
        %v428 = vpack.c.b16 %v376, %v372
        %v429 = vpack.c.b16 %v377, %v373
        %v430 = vpack.c.b16 %v378, %v374
        %v431 = vpack.c.b16 %v383, %v379
        %v432 = vpack.c.b16 %v384, %v380
        %v433 = vpack.c.b16 %v385, %v381
        %v434 = vpack.c.b16 %v386, %v382
        %v435 = vpack.c.b16 %v391, %v387
        %v436 = vpack.c.b16 %v392, %v388
        %v437 = vpack.c.b16 %v393, %v389
        %v438 = vpack.c.b16 %v394, %v390
        %v439 = vpack.c.b16 %v399, %v395
        %v440 = vpack.c.b16 %v400, %v396
        %v441 = vpack.c.b16 %v401, %v397
        %v442 = vpack.c.b16 %v402, %v398
        %v443 = vpack.c.b16 %v407, %v403
        %v444 = vpack.c.b16 %v408, %v404
        %v445 = vpack.c.b16 %v409, %v405
        %v446 = vpack.c.b16 %v410, %v406
        %v447 = vpack.c.b16 %v415, %v411
        %v448 = vpack.c.b16 %v416, %v412
        %v449 = vpack.c.b16 %v417, %v413
        %v450 = vpack.c.b16 %v418, %v414
        %483 = vmatprep.subr.bf16.mxu0 %v448
        %484 = vmatpush1.bf16.msra.mxu0 %v447
        %485 = vmatprep.subr.bf16.mxu0 %v444
        %486 = vmatpush1.bf16.msra.mxu0 %v443
        %487 = vmatprep.subr.bf16.mxu0 %v440
        %488 = vmatpush1.bf16.msra.mxu0 %v439
        %489 = vmatprep.subr.bf16.mxu0 %v436
        %490 = vmatpush1.bf16.msra.mxu0 %v435
        %491 = vmatprep.subr.bf16.mxu0 %v432
        %492 = vmatpush1.bf16.msra.mxu0 %v431
        %493 = vmatprep.subr.bf16.mxu0 %v428
        %494 = vmatpush1.bf16.msra.mxu0 %v427
        %495 = vmatprep.subr.bf16.mxu0 %v424
        %496 = vmatpush1.bf16.msra.mxu0 %v423
        %497 = vmatprep.subr.bf16.mxu0 %v420
        %498 = vmatpush1.bf16.msra.mxu0 %v419
        %499 = vmatprep.subr.bf16.mxu0 0
        %500 = vmatpush2.bf16.msra.mxu0 0
        %501 = vmatprep.subr.bf16.mxu0 0
        %502 = vmatpush2.bf16.msra.mxu0 0
        %503 = vmatprep.subr.bf16.mxu0 0
        %504 = vmatpush2.bf16.msra.mxu0 0
        %505 = vmatprep.subr.bf16.mxu0 0
        %506 = vmatpush2.bf16.msra.mxu0 0
        %507 = vmatprep.subr.bf16.mxu0 0
        %508 = vmatpush2.bf16.msra.mxu0 0
        %509 = vmatprep.subr.bf16.mxu0 0
        %510 = vmatpush2.bf16.msra.mxu0 0
        %511 = vmatprep.subr.bf16.mxu0 0
        %512 = vmatpush2.bf16.msra.mxu0 0
        %513 = vmatprep.subr.bf16.mxu0 0
        %514 = vmatpush2.bf16.msra.mxu0 0
        %515 = vmatprep.mubr.bf16.mxu0 0
        %516 = vmatmul.mubr.bf16.gmra.mxu0 %v290
        %v517 = vpop.f32.mrf.mxu0
        %v518 = vadd.f32 0.0, %v517
        %v519 = vpop.f32.mrf.mxu0
        %v520 = vadd.f32 0.0, %v519
        %v521 = vpop.f32.mrf.mxu0
        %v522 = vpop.f32.mrf.mxu0
        %523 = vdwg.mxu0
        %524 = vmatprep.subr.bf16.mxu0 %v450
        %525 = vmatpush1.bf16.msra.mxu0 %v449
        %526 = vmatprep.subr.bf16.mxu0 %v446
        %527 = vmatpush1.bf16.msra.mxu0 %v445
        %528 = vmatprep.subr.bf16.mxu0 %v442
        %529 = vmatpush1.bf16.msra.mxu0 %v441
        %530 = vmatprep.subr.bf16.mxu0 %v438
        %531 = vmatpush1.bf16.msra.mxu0 %v437
        %532 = vmatprep.subr.bf16.mxu0 %v434
        %533 = vmatpush1.bf16.msra.mxu0 %v433
        %534 = vmatprep.subr.bf16.mxu0 %v430
        %535 = vmatpush1.bf16.msra.mxu0 %v429
        %536 = vmatprep.subr.bf16.mxu0 %v426
        %537 = vmatpush1.bf16.msra.mxu0 %v425
        %538 = vmatprep.subr.bf16.mxu0 %v422
        %539 = vmatpush1.bf16.msra.mxu0 %v421
        %540 = vmatprep.subr.bf16.mxu0 0
        %541 = vmatpush2.bf16.msra.mxu0 0
        %542 = vmatprep.subr.bf16.mxu0 0
        %543 = vmatpush2.bf16.msra.mxu0 0
        %544 = vmatprep.subr.bf16.mxu0 0
        %545 = vmatpush2.bf16.msra.mxu0 0
        %546 = vmatprep.subr.bf16.mxu0 0
        %547 = vmatpush2.bf16.msra.mxu0 0
        %548 = vmatprep.subr.bf16.mxu0 0
        %549 = vmatpush2.bf16.msra.mxu0 0
        %550 = vmatprep.subr.bf16.mxu0 0
        %551 = vmatpush2.bf16.msra.mxu0 0
        %552 = vmatprep.subr.bf16.mxu0 0
        %553 = vmatpush2.bf16.msra.mxu0 0
        %554 = vmatprep.subr.bf16.mxu0 0
        %555 = vmatpush2.bf16.msra.mxu0 0
        %556 = vmatprep.mubr.bf16.mxu0 0
        %557 = vmatmul.mubr.bf16.gmra.mxu0 %v290
        %v558 = vpop.f32.mrf.mxu0
        %v559 = vadd.f32 0.0, %v558
        %v560 = vpop.f32.mrf.mxu0
        %v561 = vadd.f32 0.0, %v560
        %v562 = vpop.f32.mrf.mxu0
        %v563 = vpop.f32.mrf.mxu0
        %564 = vdwg.mxu0
        %v565 = vadd.f32 %v286, %v518
        %v566 = vadd.f32 %v287, %v520
        %v567 = vadd.f32 %v288, %v559
        %v568 = vadd.f32 %v289, %v561
        %569 = vst [vmem:[#allocation2] sm:$0xff] %v565
        %570 = vst [vmem:[#allocation2 + $0x8] sm:$0xff] %v566
        %571 = vst [vmem:[#allocation2 + $0x10] sm:$0xff] %v567
        %572 = vst [vmem:[#allocation2 + $0x18] sm:$0xff] %v568
        // Predicated region
        $region49: #{tpu_custom_call.1} parent=31 // pred_check
          %p573 = pneg %p278
        $region50: #{tpu_custom_call.1} parent=31 // pred_check_branch
          %575 = sbr.rel (%p573) target = $region52
        $region51: #{tpu_custom_call.1} parent=31 // pred_region
          %v576 = vld [vmem:[#allocation2] sm:$0xff]
          %v577 = vld [vmem:[#allocation2 + $0x8] sm:$0xff]
          %v578 = vld [vmem:[#allocation2 + $0x10] sm:$0xff]
          %v579 = vld [vmem:[#allocation2 + $0x18] sm:$0xff]
          %v580 = vld [vmem:[%s245] sm:$0xf]
          %v582 = vlaneseq
          %v583 = vshrl.u32 %v582, 7
          %v584 = vsub.s32 0, %v583
          %v585 = vrot.slane %v580, %v584
          %v586 = vlaneseq
          %v587 = vshrl.u32 %v586, 7
          %v588 = vsub.s32 1, %v587
          %v589 = vrot.slane %v580, %v588
          %v590 = vlaneseq
          %v591 = vshrl.u32 %v590, 7
          %v592 = vsub.s32 2, %v591
          %v593 = vrot.slane %v580, %v592
          %v594 = vlaneseq
          %v595 = vshrl.u32 %v594, 7
          %v596 = vsub.s32 3, %v595
          %v597 = vrot.slane %v580, %v596
          %v602 = vadd.f32 %v576, %v585
          %v603 = vadd.f32 %v577, %v589
          %v604 = vadd.f32 %v578, %v593
          %v605 = vadd.f32 %v579, %v597
          %v606 = vtanh.pop %v602
          %v607 = vtanh.pop %v603
          %v608 = vtanh.pop %v604
          %v609 = vtanh.pop %v605
          %v610 = vpack.c.bf16 %v606, %v606
          %v611 = vpack.c.bf16 %v607, %v607
          %v612 = vpack.c.bf16 %v608, %v608
          %v613 = vpack.c.bf16 %v609, %v609
          %v618 = vunpack.c.l.b16 %v610
          %v619 = vunpack.c.l.b16 %v611
          %v620 = vunpack.c.l.b16 %v612
          %v621 = vunpack.c.l.b16 %v613
          %v622 = vpack.c.b16 %v619, %v618
          %v623 = vpack.c.b16 %v621, %v620
          %626 = vst [vmem:[%s272] sm:$0xff] %v622
          %627 = vst [vmem:[%s272 + $0x8] sm:$0xff] %v623
        $region52: #{tpu_custom_call.1} parent=31 // pred_fallthru
          _
        %s628 = sand.u32 %s132, 1
        %s629 = scalar_lea.sflag [#allocation5], %s628
        %s630 = sand.u32 %s132, 1
        %s631 = smul.addr %s630, 16
        %s632 = scalar_lea.vmem [#allocation9], %s631
        // Predicated region
        $region53: #{tpu_custom_call.1} parent=31 // pred_check
          %p633 = pneg %p142
        $region54: #{tpu_custom_call.1} parent=31 // pred_check_branch
          %635 = sbr.rel (%p633) target = $region56
        $region55: #{tpu_custom_call.1} parent=31 // pred_region
          %s636 = smul.u32 4, %s27
          %s638 = ssub.s32 256, 256
          %639 = vsyncadd %s629, %s638
          %s640 = smul.addr %s26, 8
          %s641 = sadd.s32 %s636, %s640
          %s642 = smul.addr %s641, 64
          %s643 = scalar_lea.hbm %s3, %s642
          %s645 = sshll.u32 %s632, 4
          %s646 = int_to_ptr.vmem [resolvable:$true] %s645
          %648 = dma.vmem_to_hbm [thread:$0]  %s646, 256, %s643, %s629
        $region56: #{tpu_custom_call.1} parent=31 // pred_fallthru
          _
      $region32: #{tpu_custom_call.1} parent=5 // pred_fallthru
        _
      %p649 = scmp.le.s32.totalorder 2, %s16
      // Predicated region
      $region57: #{tpu_custom_call.1} parent=5 // pred_check
        %p650 = pneg %p649
      $region58: #{tpu_custom_call.1} parent=5 // pred_check_branch
        %652 = sbr.rel (%p650) target = $region60
      $region59: #{tpu_custom_call.1} parent=5 // pred_region
        %s653 = ssub.s32 %s16, 2
        // Predicated region
        $region61: #{tpu_custom_call.1} parent=59 // pred_check
          %p654 = pneg %p148
        $region62: #{tpu_custom_call.1} parent=59 // pred_check_branch
          %656 = sbr.rel (%p654) target = $region64
        $region63: #{tpu_custom_call.1} parent=59 // pred_region
          %s657 = sand.u32 %s133, 1
          %s658 = scalar_lea.sflag [#allocation5], %s657
          %s659 = sand.u32 %s133, 1
          %s660 = smul.addr %s659, 16
          %s661 = scalar_lea.vmem [#allocation9], %s660
          %662 = dma.done %s658, 256
        $region64: #{tpu_custom_call.1} parent=59 // pred_fallthru
          _
      $region60: #{tpu_custom_call.1} parent=5 // pred_fallthru
        _
    $region6: #{tpu_custom_call.1} parent=1 // loop_footer
      %s20 = sadd.s32 1, %s16
    $region7: #{tpu_custom_call.1} parent=1 // loop_footer_branch
      %15 = sbr.rel target = $region3
    $region8: #{tpu_custom_call.1} parent=1 // loop_exit
      _
    %663 = vsyncpa [#allocation4], 1
    %s664 = scalar_lea.sflag [#allocation4], 1
    %665 = vsyncpa %s664, 1
    %666 = vsyncpa [#allocation7], 1
    %s667 = scalar_lea.sflag [#allocation7], 1
    %668 = vsyncpa %s667, 1
    %669 = vsyncpa [#allocation5], 1
    %s670 = scalar_lea.sflag [#allocation5], 1
    %671 = vsyncpa %s670, 1

</llo_original>
